<compile_context>
chip_gen: v7x
topology: tpu7x:2x2x1
jax: 0.10.0
libtpu: 0.0.40
codegen_flags: <defaults>
</compile_context>

<pallas_src>
import functools

import jax
import jax.numpy as jnp
from jax.experimental import pallas as pl
from jax.experimental.pallas import tpu as pltpu


def _output_gate_kernel(x_ref, s_ref, ltm_ref, w_ref, b_ref, o_ref, *, mxu_dtype):
    # add (VPU) -> matmul (MXU) -> bias + sigmoid/tanh (VPU/EUP) -> mul (VPU);
    # the whole hot path lives in this kernel.
    z = x_ref[...] + s_ref[...]                        # (tb, F) f32
    if mxu_dtype is not None:
        z = z.astype(mxu_dtype)                        # narrow MXU operand only
    # Weight arrives already in canonical (K, N) = (in, out) layout and (if
    # narrowing) already cast in the wrapper -> no per-tile F^2 transpose/cast.
    y = jnp.dot(z, w_ref[...], preferred_element_type=jnp.float32)
    y = y + b_ref[...]                                 # (1, F) f32 broadcast
    gate = jax.nn.sigmoid(y)                           # EUP
    pot = jnp.tanh(ltm_ref[...].astype(jnp.float32))   # EUP
    o_ref[...] = (pot * gate).astype(o_ref.dtype)      # VPU + lane-dense store


def _vmem_capacity_bytes():
    try:
        return int(pltpu.get_tpu_info().vmem_capacity_bytes)
    except Exception:
        return 64 << 20  # conservative fallback (v7x per-TC size)


def _default_mxu_dtype():
    # v5e's MXU has low f32 throughput -> default to bf16 MXU operands there
    # (f32 accumulate). Elementwise math stays f32 everywhere.
    try:
        kind = jax.devices()[0].device_kind.lower()
    except Exception:
        return None
    if ("v5e" in kind) or ("v5 lite" in kind) or ("v5lite" in kind):
        return jnp.bfloat16
    return None


def output_gate(inputs, long_term_memory, short_term_memory, weight, bias,
                *, block_b=512, mxu_dtype="auto"):
    """inputs/ltm/stm: (B, F) float32; weight: (F, F) PyTorch layout (out, in);
    bias: (F,). Returns (B, F) float32.

    block_b:   max batch-tile rows per grid step.
    mxu_dtype: None (full f32), a narrower dtype (e.g. jnp.bfloat16) for the
               MXU operands only, or "auto" (bf16 on v5e, f32 elsewhere).
    """
    B, F = inputs.shape
    assert weight.shape == (F, F) and bias.shape == (F,)
    if isinstance(mxu_dtype, str) and mxu_dtype == "auto":
        mxu_dtype = _default_mxu_dtype()

    # One-time weight prep in the wrapper (single F^2 HBM pass, amortized over
    # all batch tiles / calls): canonical (K, N) = (in, out) layout for the MXU
    # and, if requested, a one-time narrowing cast. (Callers that can store the
    # weight pre-transposed / pre-cast avoid even this pass.)
    w_kn = jnp.asarray(weight).T
    if mxu_dtype is not None:
        w_kn = w_kn.astype(mxu_dtype)
    # TODO(synk): on v7x, optionally quantize the resident weight to fp8
    # (f32 accumulate) to quarter its VMEM footprint when accuracy permits.
    b2 = jnp.asarray(bias, dtype=jnp.float32).reshape(1, F)

    # ---- batch tile selection ------------------------------------------------
    tb = min(block_b, B)
    if B > 8:
        # Guarantee >= 2 grid steps so the ("parallel",) batch axis can split
        # across both v7x TensorCores (and the pipeline has work to overlap).
        tb = min(tb, max(8, ((B // 2) // 8) * 8))
    if tb != B and tb % 8 != 0:
        tb = max(8, (tb // 8) * 8)

    # Generation-aware VMEM cap with headroom for compiler internal scratch:
    # ~54 MiB on v7x (64 MiB/TC), ~108 MiB on v5e/v6e (128 MiB physical).
    cap = int(_vmem_capacity_bytes() * 0.85)
    w_bytes = F * F * jnp.dtype(w_kn.dtype).itemsize
    act_itembytes = 4  # activations stay f32 (NOTE: bf16 activations would halve this)
    # Shrink the batch tile if resident weight + double-buffered activation
    # tiles would overflow the cap (matters mostly on v7x at large F).
    while tb > 8 and (2 * w_bytes + 8 * tb * F * act_itembytes + (4 << 20)) > cap:
        tb = max(8, ((tb // 2) // 8) * 8)
    nb = pl.cdiv(B, tb)
    # TODO(synk): when F^2*itemsize no longer fits VMEM-resident (e.g. F>=4096
    # f32 on v7x), add a K-reduction grid axis (weight tiled (tk, F), f32
    # accumulator scratch, reduction axis last, marked "arbitrary").

    # Activations stream per batch tile; weight/bias have constant index_maps
    # so they are DMA'd once and stay VMEM-resident across the whole grid.
    # (F should ideally be a multiple of 128 for lane-dense, unmasked stores.)
    act_spec = pl.BlockSpec((tb, F), lambda i: (i, 0))
    act_bytes = tb * F * act_itembytes

    kern = functools.partial(_output_gate_kernel, mxu_dtype=mxu_dtype)

    def _call(single_buffer_resident):
        if single_buffer_resident:
            # Grid-invariant operands: a single VMEM buffer is enough (the
            # default double-buffer would waste F^2*itemsize bytes of VMEM).
            w_spec = pl.BlockSpec((F, F), lambda i: (0, 0),
                                  pipeline_mode=pl.Buffered(1))
            b_spec = pl.BlockSpec((1, F), lambda i: (0, 0),
                                  pipeline_mode=pl.Buffered(1))
            w_buf = 1
        else:
            w_spec = pl.BlockSpec((F, F), lambda i: (0, 0))
            b_spec = pl.BlockSpec((1, F), lambda i: (0, 0))
            w_buf = 2
        vmem_budget = w_buf * w_bytes + 8 * act_bytes + (4 << 20)
        vmem_budget = int(min(max(vmem_budget, 16 << 20), cap))
        return pl.pallas_call(
            kern,
            out_shape=jax.ShapeDtypeStruct((B, F), inputs.dtype),
            grid_spec=pltpu.PrefetchScalarGridSpec(
                num_scalar_prefetch=0,
                grid=(nb,),
                in_specs=[
                    act_spec,   # inputs
                    act_spec,   # short_term_memory
                    act_spec,   # long_term_memory
                    w_spec,     # weight, pre-transposed (K, N), VMEM-resident
                    b_spec,     # bias (1, F)
                ],
                out_specs=act_spec,
            ),
            compiler_params=pltpu.CompilerParams(
                dimension_semantics=("parallel",),   # batch tiles shard across TCs
                vmem_limit_bytes=vmem_budget,
            ),
        )(inputs, short_term_memory, long_term_memory, w_kn, b2)

    try:
        return _call(True)
    except Exception:
        # pl.Buffered(1) (single-buffered resident operands) unsupported on
        # this jax/Mosaic build -- fall back to default double-buffering.
        return _call(False)


def output_gate_ref(inputs, ltm, stm, weight, bias):
    # Pure-JAX reference matching the PyTorch forward exactly.
    y = (inputs + stm) @ weight.T + bias
    return jnp.tanh(ltm) * jax.nn.sigmoid(y)


def _make_case(key, B, F):
    kx, ks, kl, kw, kb = jax.random.split(key, 5)
    inputs = jax.random.normal(kx, (B, F), dtype=jnp.float32)
    stm = jax.random.normal(ks, (B, F), dtype=jnp.float32)
    ltm = jax.random.normal(kl, (B, F), dtype=jnp.float32)
    bound = 1.0 / jnp.sqrt(jnp.float32(F))   # nn.Linear default-ish init
    weight = jax.random.uniform(kw, (F, F), minval=-bound, maxval=bound,
                                dtype=jnp.float32)
    bias = jax.random.uniform(kb, (F,), minval=-bound, maxval=bound,
                              dtype=jnp.float32)
    return inputs, ltm, stm, weight, bias


if __name__ == "__main__":
    key = jax.random.PRNGKey(0)
    k1, k2 = jax.random.split(key)

    # Case 1: small module-sized shapes, full-f32 path, tight tolerance.
    B, F = 8, 32
    inputs, ltm, stm, weight, bias = _make_case(k1, B, F)
    out = output_gate(inputs, ltm, stm, weight, bias, mxu_dtype=None)
    out = jax.block_until_ready(out)
    ref = output_gate_ref(inputs, ltm, stm, weight, bias)
    assert out.shape == (B, F)
    assert jnp.allclose(out, ref, atol=1e-5, rtol=1e-5), (
        f"f32 max err {jnp.max(jnp.abs(out - ref))}")

    # Case 2: multi-tile grid with a partial last batch tile (B % tb != 0).
    B2, F2 = 20, 128
    inputs2, ltm2, stm2, weight2, bias2 = _make_case(k2, B2, F2)
    out2 = output_gate(inputs2, ltm2, stm2, weight2, bias2, mxu_dtype=None)
    out2 = jax.block_until_ready(out2)
    ref2 = output_gate_ref(inputs2, ltm2, stm2, weight2, bias2)
    assert jnp.allclose(out2, ref2, atol=1e-4, rtol=1e-4), (
        f"f32 multi-tile max err {jnp.max(jnp.abs(out2 - ref2))}")

    # Case 3: bf16 MXU-operand path (f32 accumulate), looser tolerance.
    out3 = output_gate(inputs2, ltm2, stm2, weight2, bias2,
                       mxu_dtype=jnp.bfloat16)
    out3 = jax.block_until_ready(out3)
    assert jnp.allclose(out3, ref2, atol=3e-2, rtol=3e-2), (
        f"bf16 max err {jnp.max(jnp.abs(out3 - ref2))}")

    print("KERNEL_OK")
</pallas_src>

<mosaic_0001>
module attributes {stable_mosaic.version = 11 : i64} {
  func.func @_output_gate_kernel(%arg0: i32, %arg1: memref<8x32xf32, #tpu.memory_space<vmem>>, %arg2: memref<8x32xf32, #tpu.memory_space<vmem>>, %arg3: memref<8x32xf32, #tpu.memory_space<vmem>>, %arg4: memref<32x32xf32, #tpu.memory_space<vmem>>, %arg5: memref<1x32xf32, #tpu.memory_space<vmem>>, %arg6: memref<8x32xf32, #tpu.memory_space<vmem>>) attributes {dimension_semantics = [#tpu.dimension_semantics<parallel>], iteration_bounds = array<i64: 1>, scalar_prefetch = 0 : i64, scratch_operands = 0 : i64, tpu.core_type = #tpu.core_type<tc>, window_params = [{transform_indices = @transform_0, window_bounds = array<i64: 8, 32>}, {transform_indices = @transform_1, window_bounds = array<i64: 8, 32>}, {transform_indices = @transform_2, window_bounds = array<i64: 8, 32>}, {pipeline_mode = #tpu.pipeline_mode<synchronous>, transform_indices = @transform_3, window_bounds = array<i64: 32, 32>}, {pipeline_mode = #tpu.pipeline_mode<synchronous>, transform_indices = @transform_4, window_bounds = array<i64: 1, 32>}, {transform_indices = @transform_5, window_bounds = array<i64: 8, 32>}]} {
    %c0 = arith.constant 0 : index
    %c0_0 = arith.constant 0 : index
    %0 = vector.load %arg1[%c0, %c0_0] : memref<8x32xf32, #tpu.memory_space<vmem>>, vector<8x32xf32>
    %c0_1 = arith.constant 0 : index
    %c0_2 = arith.constant 0 : index
    %1 = vector.load %arg2[%c0_1, %c0_2] : memref<8x32xf32, #tpu.memory_space<vmem>>, vector<8x32xf32>
    %2 = arith.addf %0, %1 : vector<8x32xf32>
    %c0_3 = arith.constant 0 : index
    %c0_4 = arith.constant 0 : index
    %3 = vector.load %arg4[%c0_3, %c0_4] : memref<32x32xf32, #tpu.memory_space<vmem>>, vector<32x32xf32>
    %cst = arith.constant dense<0.000000e+00> : vector<8x32xf32>
    %4 = tpu.matmul %2, %3, %cst {dimension_numbers = #tpu.dot_dimension_numbers<[1], [0], [0], [1], [0, 0, 1, 1], [], []>} : vector<8x32xf32>, vector<32x32xf32>, vector<8x32xf32> -> vector<8x32xf32>
    %c0_5 = arith.constant 0 : index
    %c0_6 = arith.constant 0 : index
    %5 = vector.load %arg5[%c0_5, %c0_6] : memref<1x32xf32, #tpu.memory_space<vmem>>, vector<1x32xf32>
    %6 = vector.broadcast %5 : vector<1x32xf32> to vector<8x32xf32>
    %7 = arith.addf %4, %6 : vector<8x32xf32>
    %8 = arith.negf %7 : vector<8x32xf32>
    %9 = math.exp %8 : vector<8x32xf32>
    %cst_7 = arith.constant 1.000000e+00 : f32
    %10 = vector.broadcast %cst_7 : f32 to vector<8x32xf32>
    %11 = arith.addf %10, %9 : vector<8x32xf32>
    %12 = arith.divf %10, %11 : vector<8x32xf32>
    %c0_8 = arith.constant 0 : index
    %c0_9 = arith.constant 0 : index
    %13 = vector.load %arg3[%c0_8, %c0_9] : memref<8x32xf32, #tpu.memory_space<vmem>>, vector<8x32xf32>
    %14 = math.tanh %13 : vector<8x32xf32>
    %15 = arith.mulf %14, %12 : vector<8x32xf32>
    %c0_10 = arith.constant 0 : index
    %c0_11 = arith.constant 0 : index
    %16 = vector.load %arg6[%c0_10, %c0_11] : memref<8x32xf32, #tpu.memory_space<vmem>>, vector<8x32xf32>
    tpu.vector_store %arg6[%c0_10, %c0_11], %15 {strides = array<i32>} : memref<8x32xf32, #tpu.memory_space<vmem>>, vector<8x32xf32>,
    return
  }
  func.func @transform_0(%arg0: i32) -> (i32, i32) {
    %c0_i32 = arith.constant 0 : i32
    %c0_i32_0 = arith.constant 0 : i32
    return %arg0, %c0_i32 : i32, i32
  }
  func.func @transform_1(%arg0: i32) -> (i32, i32) {
    %c0_i32 = arith.constant 0 : i32
    %c0_i32_0 = arith.constant 0 : i32
    return %arg0, %c0_i32 : i32, i32
  }
  func.func @transform_2(%arg0: i32) -> (i32, i32) {
    %c0_i32 = arith.constant 0 : i32
    %c0_i32_0 = arith.constant 0 : i32
    return %arg0, %c0_i32 : i32, i32
  }
  func.func @transform_3(%arg0: i32) -> (i32, i32) {
    %c0_i32 = arith.constant 0 : i32
    %c0_i32_0 = arith.constant 0 : i32
    %c0_i32_1 = arith.constant 0 : i32
    return %c0_i32, %c0_i32_0 : i32, i32
  }
  func.func @transform_4(%arg0: i32) -> (i32, i32) {
    %c0_i32 = arith.constant 0 : i32
    %c0_i32_0 = arith.constant 0 : i32
    %c0_i32_1 = arith.constant 0 : i32
    return %c0_i32, %c0_i32_0 : i32, i32
  }
  func.func @transform_5(%arg0: i32) -> (i32, i32) {
    %c0_i32 = arith.constant 0 : i32
    %c0_i32_0 = arith.constant 0 : i32
    return %arg0, %c0_i32 : i32, i32
  }
}

module attributes {stable_mosaic.version = 11 : i64} {
  func.func @_output_gate_kernel(%arg0: i32, %arg1: memref<8x32xf32, #tpu.memory_space<vmem>>, %arg2: memref<8x32xf32, #tpu.memory_space<vmem>>, %arg3: memref<8x32xf32, #tpu.memory_space<vmem>>, %arg4: memref<32x32xf32, #tpu.memory_space<vmem>>, %arg5: memref<1x32xf32, #tpu.memory_space<vmem>>, %arg6: memref<8x32xf32, #tpu.memory_space<vmem>>) attributes {dimension_semantics = [#tpu.dimension_semantics<parallel>], iteration_bounds = array<i64: 1>, scalar_prefetch = 0 : i64, scratch_operands = 0 : i64, tpu.core_type = #tpu.core_type<tc>, window_params = [{transform_indices = @transform_0, window_bounds = array<i64: 8, 32>}, {transform_indices = @transform_1, window_bounds = array<i64: 8, 32>}, {transform_indices = @transform_2, window_bounds = array<i64: 8, 32>}, {pipeline_mode = #tpu.pipeline_mode<synchronous>, transform_indices = @transform_3, window_bounds = array<i64: 32, 32>}, {pipeline_mode = #tpu.pipeline_mode<synchronous>, transform_indices = @transform_4, window_bounds = array<i64: 1, 32>}, {transform_indices = @transform_5, window_bounds = array<i64: 8, 32>}]} {
    %c0 = arith.constant 0 : index
    %c0_0 = arith.constant 0 : index
    %0 = vector.load %arg1[%c0, %c0_0] : memref<8x32xf32, #tpu.memory_space<vmem>>, vector<8x32xf32>
    %c0_1 = arith.constant 0 : index
    %c0_2 = arith.constant 0 : index
    %1 = vector.load %arg2[%c0_1, %c0_2] : memref<8x32xf32, #tpu.memory_space<vmem>>, vector<8x32xf32>
    %2 = arith.addf %0, %1 : vector<8x32xf32>
    %c0_3 = arith.constant 0 : index
    %c0_4 = arith.constant 0 : index
    %3 = vector.load %arg4[%c0_3, %c0_4] : memref<32x32xf32, #tpu.memory_space<vmem>>, vector<32x32xf32>
    %cst = arith.constant dense<0.000000e+00> : vector<8x32xf32>
    %4 = tpu.matmul %2, %3, %cst {dimension_numbers = #tpu.dot_dimension_numbers<[1], [0], [0], [1], [0, 0, 1, 1], [], []>} : vector<8x32xf32>, vector<32x32xf32>, vector<8x32xf32> -> vector<8x32xf32>
    %c0_5 = arith.constant 0 : index
    %c0_6 = arith.constant 0 : index
    %5 = vector.load %arg5[%c0_5, %c0_6] : memref<1x32xf32, #tpu.memory_space<vmem>>, vector<1x32xf32>
    %6 = vector.broadcast %5 : vector<1x32xf32> to vector<8x32xf32>
    %7 = arith.addf %4, %6 : vector<8x32xf32>
    %8 = arith.negf %7 : vector<8x32xf32>
    %9 = math.exp %8 : vector<8x32xf32>
    %cst_7 = arith.constant 1.000000e+00 : f32
    %10 = vector.broadcast %cst_7 : f32 to vector<8x32xf32>
    %11 = arith.addf %10, %9 : vector<8x32xf32>
    %12 = arith.divf %10, %11 : vector<8x32xf32>
    %c0_8 = arith.constant 0 : index
    %c0_9 = arith.constant 0 : index
    %13 = vector.load %arg3[%c0_8, %c0_9] : memref<8x32xf32, #tpu.memory_space<vmem>>, vector<8x32xf32>
    %14 = math.tanh %13 : vector<8x32xf32>
    %15 = arith.mulf %14, %12 : vector<8x32xf32>
    %c0_10 = arith.constant 0 : index
    %c0_11 = arith.constant 0 : index
    %16 = vector.load %arg6[%c0_10, %c0_11] : memref<8x32xf32, #tpu.memory_space<vmem>>, vector<8x32xf32>
    tpu.vector_store %arg6[%c0_10, %c0_11], %15 {strides = array<i32>} : memref<8x32xf32, #tpu.memory_space<vmem>>, vector<8x32xf32>,
    return
  }
  func.func @transform_0(%arg0: i32) -> (i32, i32) {
    %c0_i32 = arith.constant 0 : i32
    %c0_i32_0 = arith.constant 0 : i32
    return %arg0, %c0_i32 : i32, i32
  }
  func.func @transform_1(%arg0: i32) -> (i32, i32) {
    %c0_i32 = arith.constant 0 : i32
    %c0_i32_0 = arith.constant 0 : i32
    return %arg0, %c0_i32 : i32, i32
  }
  func.func @transform_2(%arg0: i32) -> (i32, i32) {
    %c0_i32 = arith.constant 0 : i32
    %c0_i32_0 = arith.constant 0 : i32
    return %arg0, %c0_i32 : i32, i32
  }
  func.func @transform_3(%arg0: i32) -> (i32, i32) {
    %c0_i32 = arith.constant 0 : i32
    %c0_i32_0 = arith.constant 0 : i32
    %c0_i32_1 = arith.constant 0 : i32
    return %c0_i32, %c0_i32_0 : i32, i32
  }
  func.func @transform_4(%arg0: i32) -> (i32, i32) {
    %c0_i32 = arith.constant 0 : i32
    %c0_i32_0 = arith.constant 0 : i32
    %c0_i32_1 = arith.constant 0 : i32
    return %c0_i32, %c0_i32_0 : i32, i32
  }
  func.func @transform_5(%arg0: i32) -> (i32, i32) {
    %c0_i32 = arith.constant 0 : i32
    %c0_i32_0 = arith.constant 0 : i32
    return %arg0, %c0_i32 : i32, i32
  }
}

</mosaic_0001>

<llo_original>
// kernel: tpu_custom_call.1
$region0: #{tpu_custom_call.1}
  #allocation0 [shape = 'u32[]', space=smem, size = 0x4, offset = 0x4, fixed_abs, tag = 'smem constant byte address 0x4 - core index']
  #allocation1 [shape = 'u32[144,128]{1,0:T(1,128)}', space=vmem, size = 0x12000, scoped, tag = 'internal scratch']
  %s0 = inlined_call_operand.hbm [shape: f32[8,32], index: 0, kind: input, shape index: {}]
  %s1 = inlined_call_operand.hbm [shape: f32[8,32], index: 1, kind: input, shape index: {}]
  %s2 = inlined_call_operand.hbm [shape: f32[8,32], index: 2, kind: input, shape index: {}]
  %s3 = inlined_call_operand.hbm [shape: f32[32,32], index: 3, kind: input, shape index: {}]
  %s4 = inlined_call_operand.vmem [shape: f32[1,32], index: 4, kind: input, shape index: {}]
  %s5 = inlined_call_operand.hbm [shape: f32[8,32], index: 5, kind: output, shape index: {}]
  %s6 = sld [smem:[#allocation0]]
  $region46: #{tpu_custom_call.1} parent=0
    _
  %s8 = ssub.s32 1, %s6
  %s9 = scalar_select 0, %s8, %s6
  $region1: #{tpu_custom_call.1} parent=0
    #allocation2 [shape = 'u8[4096]{0}', space=vmem, size = 0x1000, scoped, tag = 'input window, operand 0, single buffered']
    #allocation3 [shape = 's32[1]{0}', space=sflag, size = 0x4, scoped, tag = 'scoped memory for tpu_custom_call.1']
    #allocation4 [shape = 's32[1]{0}', space=sflag, size = 0x4, scoped, tag = 'scoped memory for tpu_custom_call.1']
    #allocation5 [shape = 'u8[4096]{0}', space=vmem, size = 0x1000, scoped, tag = 'input window, operand 1, single buffered']
    #allocation6 [shape = 's32[1]{0}', space=sflag, size = 0x4, scoped, tag = 'scoped memory for tpu_custom_call.1']
    #allocation7 [shape = 'u8[4096]{0}', space=vmem, size = 0x1000, scoped, tag = 'input window, operand 2, single buffered']
    #allocation8 [shape = 'u8[16384]{0}', space=vmem, size = 0x4000, scoped, tag = 'input window, operand 3, single buffered']
    #allocation9 [shape = 's32[1]{0}', space=sflag, size = 0x4, scoped, tag = 'scoped memory for tpu_custom_call.1']
    #allocation10 [shape = 'u8[4096]{0}', space=vmem, size = 0x1000, scoped, tag = 'output window, operand 0, single buffered']
    %10 = vsyncpa [#allocation3], 0
    %11 = vsyncpa [#allocation6], 0
    %12 = vsyncpa [#allocation9], 0
    %13 = vsyncpa [#allocation4], 0
    // Predicated region
    $region2: #{tpu_custom_call.1} parent=1 // pred_check
      _
    $region3: #{tpu_custom_call.1} parent=1 // pred_check_branch
      %15 = sbr.rel (0) target = $region5
    $region4: #{tpu_custom_call.1} parent=1 // pred_region
      %s17 = ssub.s32 128, 128
      %18 = vsyncadd [#allocation3], %s17
      %s20 = sshll.u32 [#allocation2], 4
      %s21 = int_to_ptr.vmem [resolvable:$true] %s20
      %23 = dma.hbm_to_vmem [thread:$0]  %s0, 128, %s21, [#allocation3]
    $region5: #{tpu_custom_call.1} parent=1 // pred_fallthru
      _
    // Predicated region
    $region6: #{tpu_custom_call.1} parent=1 // pred_check
      _
    $region7: #{tpu_custom_call.1} parent=1 // pred_check_branch
      %25 = sbr.rel (0) target = $region9
    $region8: #{tpu_custom_call.1} parent=1 // pred_region
      %s27 = ssub.s32 128, 128
      %28 = vsyncadd [#allocation6], %s27
      %s30 = sshll.u32 [#allocation5], 4
      %s31 = int_to_ptr.vmem [resolvable:$true] %s30
      %33 = dma.hbm_to_vmem [thread:$0]  %s1, 128, %s31, [#allocation6]
    $region9: #{tpu_custom_call.1} parent=1 // pred_fallthru
      _
    // Predicated region
    $region10: #{tpu_custom_call.1} parent=1 // pred_check
      _
    $region11: #{tpu_custom_call.1} parent=1 // pred_check_branch
      %35 = sbr.rel (0) target = $region13
    $region12: #{tpu_custom_call.1} parent=1 // pred_region
      %s37 = ssub.s32 128, 128
      %38 = vsyncadd [#allocation6], %s37
      %s40 = sshll.u32 [#allocation7], 4
      %s41 = int_to_ptr.vmem [resolvable:$true] %s40
      %43 = dma.hbm_to_vmem [thread:$0]  %s2, 128, %s41, [#allocation6]
    $region13: #{tpu_custom_call.1} parent=1 // pred_fallthru
      _
    // Predicated region
    $region14: #{tpu_custom_call.1} parent=1 // pred_check
      _
    $region15: #{tpu_custom_call.1} parent=1 // pred_check_branch
      %45 = sbr.rel (0) target = $region17
    $region16: #{tpu_custom_call.1} parent=1 // pred_region
      %s47 = ssub.s32 512, 512
      %48 = vsyncadd [#allocation9], %s47
      %s49 = sshll.u32 [#allocation8], 4
      %s50 = int_to_ptr.vmem [resolvable:$true] %s49
      %55 = dma.hbm_to_vmem [thread:$0]  %s3, 512, %s50, [#allocation9], 128, 128, 8
    $region17: #{tpu_custom_call.1} parent=1 // pred_fallthru
      _
    // Predicated region
    $region18: #{tpu_custom_call.1} parent=1 // pred_check
      _
    $region19: #{tpu_custom_call.1} parent=1 // pred_check_branch
      %57 = sbr.rel (0) target = $region21
    $region20: #{tpu_custom_call.1} parent=1 // pred_region
      _
    $region21: #{tpu_custom_call.1} parent=1 // pred_fallthru
      _
    // Predicated region
    $region22: #{tpu_custom_call.1} parent=1 // pred_check
      _
    $region23: #{tpu_custom_call.1} parent=1 // pred_check_branch
      %59 = sbr.rel (0) target = $region25
    $region24: #{tpu_custom_call.1} parent=1 // pred_region
      %60 = dma.done [#allocation3], 128
    $region25: #{tpu_custom_call.1} parent=1 // pred_fallthru
      _
    // Predicated region
    $region26: #{tpu_custom_call.1} parent=1 // pred_check
      _
    $region27: #{tpu_custom_call.1} parent=1 // pred_check_branch
      %62 = sbr.rel (0) target = $region29
    $region28: #{tpu_custom_call.1} parent=1 // pred_region
      %63 = dma.done [#allocation6], 128
    $region29: #{tpu_custom_call.1} parent=1 // pred_fallthru
      _
    // Predicated region
    $region30: #{tpu_custom_call.1} parent=1 // pred_check
      _
    $region31: #{tpu_custom_call.1} parent=1 // pred_check_branch
      %65 = sbr.rel (0) target = $region33
    $region32: #{tpu_custom_call.1} parent=1 // pred_region
      %66 = dma.done [#allocation6], 128
    $region33: #{tpu_custom_call.1} parent=1 // pred_fallthru
      _
    // Predicated region
    $region34: #{tpu_custom_call.1} parent=1 // pred_check
      _
    $region35: #{tpu_custom_call.1} parent=1 // pred_check_branch
      %68 = sbr.rel (0) target = $region37
    $region36: #{tpu_custom_call.1} parent=1 // pred_region
      %69 = dma.done [#allocation9], 512
    $region37: #{tpu_custom_call.1} parent=1 // pred_fallthru
      _
    %v70 = vld [vmem:[#allocation2] sm:$0xff]
    %v71 = vld [vmem:[#allocation5] sm:$0xff]
    %v72 = vadd.f32 %v70, %v71
    %v73 = vld [vmem:[#allocation8] sm:$0xff]
    %v74 = vld [vmem:[#allocation8 + $0x8] sm:$0xff]
    %v75 = vld [vmem:[#allocation8 + $0x10] sm:$0xff]
    %v76 = vld [vmem:[#allocation8 + $0x18] sm:$0xff]
    %v77 = vld [vmem:[%s4] sm:$0x1]
    %v79 = vlaneseq
    %v80 = vshrl.u32 %v79, 7
    %v81 = vsub.s32 0, %v80
    %v82 = vrot.slane %v77, %v81
    %vm84 = vcmask 261120
    %v86 = vsel %vm84, %v72, 0
    %88 = vmatprep.subr.mxu0 0.0
    %89 = vmatpush1.msra.mxu0 %v73
    %90 = vmatprep.subr.mxu0 0.0
    %91 = vmatpush1.msra.mxu0 %v74
    %92 = vmatprep.subr.mxu0 0.0
    %93 = vmatpush1.msra.mxu0 %v75
    %94 = vmatprep.subr.mxu0 0.0
    %95 = vmatpush1.msra.mxu0 %v76
    %96 = vmatprep.subr.mxu0 0.0
    %97 = vmatpush1.msra.mxu0 0.0
    %98 = vmatprep.subr.mxu0 0.0
    %99 = vmatpush1.msra.mxu0 0.0
    %100 = vmatprep.subr.mxu0 0.0
    %101 = vmatpush1.msra.mxu0 0.0
    %102 = vmatprep.subr.mxu0 0.0
    %103 = vmatpush1.msra.mxu0 0.0
    %104 = vmatprep.subr.mxu0 0.0
    %105 = vmatpush1.msra.mxu0 0.0
    %106 = vmatprep.subr.mxu0 0.0
    %107 = vmatpush1.msra.mxu0 0.0
    %108 = vmatprep.subr.mxu0 0.0
    %109 = vmatpush1.msra.mxu0 0.0
    %110 = vmatprep.subr.mxu0 0.0
    %111 = vmatpush1.msra.mxu0 0.0
    %112 = vmatprep.subr.mxu0 0.0
    %113 = vmatpush1.msra.mxu0 0.0
    %114 = vmatprep.subr.mxu0 0.0
    %115 = vmatpush1.msra.mxu0 0.0
    %116 = vmatprep.subr.mxu0 0.0
    %117 = vmatpush1.msra.mxu0 0.0
    %118 = vmatprep.subr.mxu0 0.0
    %119 = vmatpush1.msra.mxu0 0.0
    %120 = vmatprep.subr.mxu0 0.0
    %121 = vmatpush1.msra.mxu0 0.0
    %122 = vmatprep.subr.mxu0 0.0
    %123 = vmatpush1.msra.mxu0 0.0
    %124 = vmatprep.subr.mxu0 0.0
    %125 = vmatpush1.msra.mxu0 0.0
    %126 = vmatprep.subr.mxu0 0.0
    %127 = vmatpush1.msra.mxu0 0.0
    %128 = vmatprep.subr.mxu0 0.0
    %129 = vmatpush1.msra.mxu0 0.0
    %130 = vmatprep.subr.mxu0 0.0
    %131 = vmatpush1.msra.mxu0 0.0
    %132 = vmatprep.subr.mxu0 0.0
    %133 = vmatpush1.msra.mxu0 0.0
    %134 = vmatprep.subr.mxu0 0.0
    %135 = vmatpush1.msra.mxu0 0.0
    %136 = vmatprep.subr.mxu0 0.0
    %137 = vmatpush1.msra.mxu0 0.0
    %138 = vmatprep.subr.mxu0 0.0
    %139 = vmatpush1.msra.mxu0 0.0
    %140 = vmatprep.subr.mxu0 0.0
    %141 = vmatpush1.msra.mxu0 0.0
    %142 = vmatprep.subr.mxu0 0.0
    %143 = vmatpush1.msra.mxu0 0.0
    %144 = vmatprep.subr.mxu0 0.0
    %145 = vmatpush1.msra.mxu0 0.0
    %146 = vmatprep.subr.mxu0 0.0
    %147 = vmatpush1.msra.mxu0 0.0
    %148 = vmatprep.subr.mxu0 0.0
    %149 = vmatpush1.msra.mxu0 0.0
    %150 = vmatprep.subr.mxu0 0.0
    %151 = vmatpush1.msra.mxu0 0.0
    %152 = vmatprep.mubr.f32.mxu0 0.0
    %153 = vmatmul.mubr.f32.gmra.mrb[0].mxu0 %v86
    %v154 = vpop.f32.mrb[0].mxu0
    %v155 = vadd.f32 %v82, %v154
    %v156 = vpop.f32.mrb[0].mxu0
    %157 = vdwg.mxu0
    %v158 = vxor.u32 %v155, 2147483648
    %v159 = vmul.f32 %v158, 1.442695
    %v160 = vpow.pop %v159
    %v161 = vadd.f32 %v160, 1.0
    %v162 = vrcp.pop %v161
    %v163 = vmul.f32 1.0, %v162
    %v164 = vld [vmem:[#allocation7] sm:$0xff]
    %v165 = vtanh.pop %v164
    %v166 = vmul.f32 %v165, %v163
    %167 = vst.msk [vmem:[#allocation10] sm:$0xff] %vm84, %v166
    // Predicated region
    $region38: #{tpu_custom_call.1} parent=1 // pred_check
      _
    $region39: #{tpu_custom_call.1} parent=1 // pred_check_branch
      %169 = sbr.rel (0) target = $region41
    $region40: #{tpu_custom_call.1} parent=1 // pred_region
      %s171 = ssub.s32 128, 128
      %172 = vsyncadd [#allocation4], %s171
      %s174 = sshll.u32 [#allocation10], 4
      %s175 = int_to_ptr.vmem [resolvable:$true] %s174
      %177 = dma.vmem_to_hbm [thread:$0]  %s175, 128, %s5, [#allocation4]
    $region41: #{tpu_custom_call.1} parent=1 // pred_fallthru
      _
    // Predicated region
    $region42: #{tpu_custom_call.1} parent=1 // pred_check
      _
    $region43: #{tpu_custom_call.1} parent=1 // pred_check_branch
      %179 = sbr.rel (0) target = $region45
    $region44: #{tpu_custom_call.1} parent=1 // pred_region
      %180 = dma.done [#allocation4], 128
    $region45: #{tpu_custom_call.1} parent=1 // pred_fallthru
      _
    %181 = vsyncpa [#allocation3], 1
    %182 = vsyncpa [#allocation6], 1
    %183 = vsyncpa [#allocation9], 1
    %184 = vsyncpa [#allocation4], 1

// kernel: tpu_custom_call.1
$region0: #{tpu_custom_call.1}
  #allocation0 [shape = 'u32[]', space=smem, size = 0x4, offset = 0x4, fixed_abs, tag = 'smem constant byte address 0x4 - core index']
  #allocation1 [shape = 'u32[144,128]{1,0:T(1,128)}', space=vmem, size = 0x12000, scoped, tag = 'internal scratch']
  %s0 = inlined_call_operand.hbm [shape: f32[8,32], index: 0, kind: input, shape index: {}]
  %s1 = inlined_call_operand.hbm [shape: f32[8,32], index: 1, kind: input, shape index: {}]
  %s2 = inlined_call_operand.hbm [shape: f32[8,32], index: 2, kind: input, shape index: {}]
  %s3 = inlined_call_operand.hbm [shape: f32[32,32], index: 3, kind: input, shape index: {}]
  %s4 = inlined_call_operand.vmem [shape: f32[1,32], index: 4, kind: input, shape index: {}]
  %s5 = inlined_call_operand.hbm [shape: f32[8,32], index: 5, kind: output, shape index: {}]
  %s6 = sld [smem:[#allocation0]]
  $region46: #{tpu_custom_call.1} parent=0
    _
  %s8 = ssub.s32 1, %s6
  %s9 = scalar_select 0, %s8, %s6
  $region1: #{tpu_custom_call.1} parent=0
    #allocation2 [shape = 'u8[4096]{0}', space=vmem, size = 0x1000, scoped, tag = 'input window, operand 0, single buffered']
    #allocation3 [shape = 's32[1]{0}', space=sflag, size = 0x4, scoped, tag = 'scoped memory for tpu_custom_call.1']
    #allocation4 [shape = 's32[1]{0}', space=sflag, size = 0x4, scoped, tag = 'scoped memory for tpu_custom_call.1']
    #allocation5 [shape = 'u8[4096]{0}', space=vmem, size = 0x1000, scoped, tag = 'input window, operand 1, single buffered']
    #allocation6 [shape = 's32[1]{0}', space=sflag, size = 0x4, scoped, tag = 'scoped memory for tpu_custom_call.1']
    #allocation7 [shape = 'u8[4096]{0}', space=vmem, size = 0x1000, scoped, tag = 'input window, operand 2, single buffered']
    #allocation8 [shape = 'u8[16384]{0}', space=vmem, size = 0x4000, scoped, tag = 'input window, operand 3, single buffered']
    #allocation9 [shape = 's32[1]{0}', space=sflag, size = 0x4, scoped, tag = 'scoped memory for tpu_custom_call.1']
    #allocation10 [shape = 'u8[4096]{0}', space=vmem, size = 0x1000, scoped, tag = 'output window, operand 0, single buffered']
    %10 = vsyncpa [#allocation3], 0
    %11 = vsyncpa [#allocation6], 0
    %12 = vsyncpa [#allocation9], 0
    %13 = vsyncpa [#allocation4], 0
    // Predicated region
    $region2: #{tpu_custom_call.1} parent=1 // pred_check
      _
    $region3: #{tpu_custom_call.1} parent=1 // pred_check_branch
      %15 = sbr.rel (0) target = $region5
    $region4: #{tpu_custom_call.1} parent=1 // pred_region
      %s17 = ssub.s32 128, 128
      %18 = vsyncadd [#allocation3], %s17
      %s20 = sshll.u32 [#allocation2], 4
      %s21 = int_to_ptr.vmem [resolvable:$true] %s20
      %23 = dma.hbm_to_vmem [thread:$0]  %s0, 128, %s21, [#allocation3]
    $region5: #{tpu_custom_call.1} parent=1 // pred_fallthru
      _
    // Predicated region
    $region6: #{tpu_custom_call.1} parent=1 // pred_check
      _
    $region7: #{tpu_custom_call.1} parent=1 // pred_check_branch
      %25 = sbr.rel (0) target = $region9
    $region8: #{tpu_custom_call.1} parent=1 // pred_region
      %s27 = ssub.s32 128, 128
      %28 = vsyncadd [#allocation6], %s27
      %s30 = sshll.u32 [#allocation5], 4
      %s31 = int_to_ptr.vmem [resolvable:$true] %s30
      %33 = dma.hbm_to_vmem [thread:$0]  %s1, 128, %s31, [#allocation6]
    $region9: #{tpu_custom_call.1} parent=1 // pred_fallthru
      _
    // Predicated region
    $region10: #{tpu_custom_call.1} parent=1 // pred_check
      _
    $region11: #{tpu_custom_call.1} parent=1 // pred_check_branch
      %35 = sbr.rel (0) target = $region13
    $region12: #{tpu_custom_call.1} parent=1 // pred_region
      %s37 = ssub.s32 128, 128
      %38 = vsyncadd [#allocation6], %s37
      %s40 = sshll.u32 [#allocation7], 4
      %s41 = int_to_ptr.vmem [resolvable:$true] %s40
      %43 = dma.hbm_to_vmem [thread:$0]  %s2, 128, %s41, [#allocation6]
    $region13: #{tpu_custom_call.1} parent=1 // pred_fallthru
      _
    // Predicated region
    $region14: #{tpu_custom_call.1} parent=1 // pred_check
      _
    $region15: #{tpu_custom_call.1} parent=1 // pred_check_branch
      %45 = sbr.rel (0) target = $region17
    $region16: #{tpu_custom_call.1} parent=1 // pred_region
      %s47 = ssub.s32 512, 512
      %48 = vsyncadd [#allocation9], %s47
      %s49 = sshll.u32 [#allocation8], 4
      %s50 = int_to_ptr.vmem [resolvable:$true] %s49
      %55 = dma.hbm_to_vmem [thread:$0]  %s3, 512, %s50, [#allocation9], 128, 128, 8
    $region17: #{tpu_custom_call.1} parent=1 // pred_fallthru
      _
    // Predicated region
    $region18: #{tpu_custom_call.1} parent=1 // pred_check
      _
    $region19: #{tpu_custom_call.1} parent=1 // pred_check_branch
      %57 = sbr.rel (0) target = $region21
    $region20: #{tpu_custom_call.1} parent=1 // pred_region
      _
    $region21: #{tpu_custom_call.1} parent=1 // pred_fallthru
      _
    // Predicated region
    $region22: #{tpu_custom_call.1} parent=1 // pred_check
      _
    $region23: #{tpu_custom_call.1} parent=1 // pred_check_branch
      %59 = sbr.rel (0) target = $region25
    $region24: #{tpu_custom_call.1} parent=1 // pred_region
      %60 = dma.done [#allocation3], 128
    $region25: #{tpu_custom_call.1} parent=1 // pred_fallthru
      _
    // Predicated region
    $region26: #{tpu_custom_call.1} parent=1 // pred_check
      _
    $region27: #{tpu_custom_call.1} parent=1 // pred_check_branch
      %62 = sbr.rel (0) target = $region29
    $region28: #{tpu_custom_call.1} parent=1 // pred_region
      %63 = dma.done [#allocation6], 128
    $region29: #{tpu_custom_call.1} parent=1 // pred_fallthru
      _
    // Predicated region
    $region30: #{tpu_custom_call.1} parent=1 // pred_check
      _
    $region31: #{tpu_custom_call.1} parent=1 // pred_check_branch
      %65 = sbr.rel (0) target = $region33
    $region32: #{tpu_custom_call.1} parent=1 // pred_region
      %66 = dma.done [#allocation6], 128
    $region33: #{tpu_custom_call.1} parent=1 // pred_fallthru
      _
    // Predicated region
    $region34: #{tpu_custom_call.1} parent=1 // pred_check
      _
    $region35: #{tpu_custom_call.1} parent=1 // pred_check_branch
      %68 = sbr.rel (0) target = $region37
    $region36: #{tpu_custom_call.1} parent=1 // pred_region
      %69 = dma.done [#allocation9], 512
    $region37: #{tpu_custom_call.1} parent=1 // pred_fallthru
      _
    %v70 = vld [vmem:[#allocation2] sm:$0xff]
    %v71 = vld [vmem:[#allocation5] sm:$0xff]
    %v72 = vadd.f32 %v70, %v71
    %v73 = vld [vmem:[#allocation8] sm:$0xff]
    %v74 = vld [vmem:[#allocation8 + $0x8] sm:$0xff]
    %v75 = vld [vmem:[#allocation8 + $0x10] sm:$0xff]
    %v76 = vld [vmem:[#allocation8 + $0x18] sm:$0xff]
    %v77 = vld [vmem:[%s4] sm:$0x1]
    %v79 = vlaneseq
    %v80 = vshrl.u32 %v79, 7
    %v81 = vsub.s32 0, %v80
    %v82 = vrot.slane %v77, %v81
    %vm84 = vcmask 261120
    %v86 = vsel %vm84, %v72, 0
    %88 = vmatprep.subr.mxu0 0.0
    %89 = vmatpush1.msra.mxu0 %v73
    %90 = vmatprep.subr.mxu0 0.0
    %91 = vmatpush1.msra.mxu0 %v74
    %92 = vmatprep.subr.mxu0 0.0
    %93 = vmatpush1.msra.mxu0 %v75
    %94 = vmatprep.subr.mxu0 0.0
    %95 = vmatpush1.msra.mxu0 %v76
    %96 = vmatprep.subr.mxu0 0.0
    %97 = vmatpush1.msra.mxu0 0.0
    %98 = vmatprep.subr.mxu0 0.0
    %99 = vmatpush1.msra.mxu0 0.0
    %100 = vmatprep.subr.mxu0 0.0
    %101 = vmatpush1.msra.mxu0 0.0
    %102 = vmatprep.subr.mxu0 0.0
    %103 = vmatpush1.msra.mxu0 0.0
    %104 = vmatprep.subr.mxu0 0.0
    %105 = vmatpush1.msra.mxu0 0.0
    %106 = vmatprep.subr.mxu0 0.0
    %107 = vmatpush1.msra.mxu0 0.0
    %108 = vmatprep.subr.mxu0 0.0
    %109 = vmatpush1.msra.mxu0 0.0
    %110 = vmatprep.subr.mxu0 0.0
    %111 = vmatpush1.msra.mxu0 0.0
    %112 = vmatprep.subr.mxu0 0.0
    %113 = vmatpush1.msra.mxu0 0.0
    %114 = vmatprep.subr.mxu0 0.0
    %115 = vmatpush1.msra.mxu0 0.0
    %116 = vmatprep.subr.mxu0 0.0
    %117 = vmatpush1.msra.mxu0 0.0
    %118 = vmatprep.subr.mxu0 0.0
    %119 = vmatpush1.msra.mxu0 0.0
    %120 = vmatprep.subr.mxu0 0.0
    %121 = vmatpush1.msra.mxu0 0.0
    %122 = vmatprep.subr.mxu0 0.0
    %123 = vmatpush1.msra.mxu0 0.0
    %124 = vmatprep.subr.mxu0 0.0
    %125 = vmatpush1.msra.mxu0 0.0
    %126 = vmatprep.subr.mxu0 0.0
    %127 = vmatpush1.msra.mxu0 0.0
    %128 = vmatprep.subr.mxu0 0.0
    %129 = vmatpush1.msra.mxu0 0.0
    %130 = vmatprep.subr.mxu0 0.0
    %131 = vmatpush1.msra.mxu0 0.0
    %132 = vmatprep.subr.mxu0 0.0
    %133 = vmatpush1.msra.mxu0 0.0
    %134 = vmatprep.subr.mxu0 0.0
    %135 = vmatpush1.msra.mxu0 0.0
    %136 = vmatprep.subr.mxu0 0.0
    %137 = vmatpush1.msra.mxu0 0.0
    %138 = vmatprep.subr.mxu0 0.0
    %139 = vmatpush1.msra.mxu0 0.0
    %140 = vmatprep.subr.mxu0 0.0
    %141 = vmatpush1.msra.mxu0 0.0
    %142 = vmatprep.subr.mxu0 0.0
    %143 = vmatpush1.msra.mxu0 0.0
    %144 = vmatprep.subr.mxu0 0.0
    %145 = vmatpush1.msra.mxu0 0.0
    %146 = vmatprep.subr.mxu0 0.0
    %147 = vmatpush1.msra.mxu0 0.0
    %148 = vmatprep.subr.mxu0 0.0
    %149 = vmatpush1.msra.mxu0 0.0
    %150 = vmatprep.subr.mxu0 0.0
    %151 = vmatpush1.msra.mxu0 0.0
    %152 = vmatprep.mubr.f32.mxu0 0.0
    %153 = vmatmul.mubr.f32.gmra.mrb[0].mxu0 %v86
    %v154 = vpop.f32.mrb[0].mxu0
    %v155 = vadd.f32 %v82, %v154
    %v156 = vpop.f32.mrb[0].mxu0
    %157 = vdwg.mxu0
    %v158 = vxor.u32 %v155, 2147483648
    %v159 = vmul.f32 %v158, 1.442695
    %v160 = vpow.pop %v159
    %v161 = vadd.f32 %v160, 1.0
    %v162 = vrcp.pop %v161
    %v163 = vmul.f32 1.0, %v162
    %v164 = vld [vmem:[#allocation7] sm:$0xff]
    %v165 = vtanh.pop %v164
    %v166 = vmul.f32 %v165, %v163
    %167 = vst.msk [vmem:[#allocation10] sm:$0xff] %vm84, %v166
    // Predicated region
    $region38: #{tpu_custom_call.1} parent=1 // pred_check
      _
    $region39: #{tpu_custom_call.1} parent=1 // pred_check_branch
      %169 = sbr.rel (0) target = $region41
    $region40: #{tpu_custom_call.1} parent=1 // pred_region
      %s171 = ssub.s32 128, 128
      %172 = vsyncadd [#allocation4], %s171
      %s174 = sshll.u32 [#allocation10], 4
      %s175 = int_to_ptr.vmem [resolvable:$true] %s174
      %177 = dma.vmem_to_hbm [thread:$0]  %s175, 128, %s5, [#allocation4]
    $region41: #{tpu_custom_call.1} parent=1 // pred_fallthru
      _
    // Predicated region
    $region42: #{tpu_custom_call.1} parent=1 // pred_check
      _
    $region43: #{tpu_custom_call.1} parent=1 // pred_check_branch
      %179 = sbr.rel (0) target = $region45
    $region44: #{tpu_custom_call.1} parent=1 // pred_region
      %180 = dma.done [#allocation4], 128
    $region45: #{tpu_custom_call.1} parent=1 // pred_fallthru
      _
    %181 = vsyncpa [#allocation3], 1
    %182 = vsyncpa [#allocation6], 1
    %183 = vsyncpa [#allocation9], 1
    %184 = vsyncpa [#allocation4], 1

</llo_original>
